<compile_context>
chip_gen: v7x
topology: tpu7x:2x2x1
jax: 0.10.0
libtpu: 0.0.40
codegen_flags: <defaults>
</compile_context>

<pallas_src>
import jax
import jax.numpy as jnp
from jax.experimental import pallas as pl
from jax.experimental.pallas import tpu as pltpu


def _bahdanau_kernel(enc_ref, dec_ref, we_ref, wd_ref, v_ref,
                     scores_ref, ctx_ref):
    # enc_ref: (Bt, S, M)   dec_ref: (Bt, M)
    # we_ref/wd_ref: (M, A) v_ref: (1, A)
    Bt, S, M = enc_ref.shape
    A = we_ref.shape[1]

    enc = enc_ref[...]                                     # native dtype, no cast

    # Encoder projection as a single tall (Bt*S, M) @ (M, A) MXU contraction
    # (native-dtype operands straight into the MXU, f32 accumulation).  The
    # reshape only merges the leading sublane/tile dims; M stays on lanes.
    pe = jnp.dot(enc.reshape(Bt * S, M), we_ref[...],
                 preferred_element_type=jnp.float32).reshape(Bt, S, A)
    # Decoder projection hoisted to a single (Bt, M) @ (M, A) matmul per block.
    pd = jnp.dot(dec_ref[...], wd_ref[...],
                 preferred_element_type=jnp.float32)       # (Bt, A)

    # Post-matmul math stays in f32 (fast path on v5e, accurate everywhere).
    h = jnp.tanh(pe + pd[:, None, :])                      # (Bt, S, A)

    # Scores via VPU multiply + lane reduce (avoids a degenerate N=1 MXU
    # matmul) and lands directly in the lane-dense (Bt, S) layout.
    v_row = v_ref[...].astype(jnp.float32)                 # (1, A)
    s = jnp.sum(h * v_row, axis=-1)                        # (Bt, S)
    scores_ref[...] = s.astype(scores_ref.dtype)

    # Softmax over the sequence axis (last / lane axis here == dim=1 in torch).
    m = jnp.max(s, axis=-1, keepdims=True)                 # (Bt, 1)
    p = jnp.exp(s - m)                                      # (Bt, S)
    p = p * pl.reciprocal(jnp.sum(p, axis=-1, keepdims=True), approx=False)

    # context = sum_s probs * enc   (broadcast-mul + sublane reduce, f32 acc).
    ctx = jnp.sum(p[:, :, None] * enc.astype(jnp.float32), axis=1)   # (Bt, M)
    ctx_ref[...] = ctx.astype(ctx_ref.dtype)


def _vmem_capacity_bytes():
    """Per-core VMEM capacity; conservative (v7x-sized) fallback if unknown."""
    try:
        cap = int(pltpu.get_tpu_info().vmem_capacity_bytes)
        if cap > 0:
            return cap
    except Exception:
        pass
    return 64 << 20


def _num_tensorcores():
    """Best-effort TensorCore count per chip (v7x has 2, v5e/v6e have 1)."""
    try:
        info = pltpu.get_tpu_info()
        for name in ("num_tensorcores", "tensorcore_count", "num_cores",
                     "cores_per_chip"):
            n = getattr(info, name, None)
            if isinstance(n, int) and n > 0:
                return n
    except Exception:
        pass
    try:
        n = getattr(jax.devices()[0], "num_cores", None)
        if isinstance(n, int) and n > 0:
            return n
    except Exception:
        pass
    return 1


def _pick_batch_block(B, S, M, A, itemsize, vmem_budget_bytes,
                      prefer_multi_step):
    """Pick a batch tile Bt that divides B and keeps 2-D blocks sublane-aligned
    (Bt % 8 == 0 or Bt == B).  The footprint counts the double-buffered inputs
    AND the f32 intermediates (pe, h, p*enc product), not just the enc block,
    so the choice also holds on v7x's 64 MiB VMEM.  Prefer >=2 grid steps only
    on dual-TC chips; on single-TC chips one big block is strictly faster."""
    def footprint(bt):
        enc_in = 2 * bt * S * M * itemsize              # double-buffered input
        dec_in = 2 * bt * M * itemsize
        outs = 2 * (bt * S + bt * M) * itemsize         # double-buffered outputs
        weights = 2 * (2 * M * A + A) * itemsize
        interm = 4 * bt * S * (2 * A + M + 4)           # pe + h + p*enc + rows (f32)
        return enc_in + dec_in + outs + weights + interm

    aligned = [d for d in range(1, B + 1)
               if B % d == 0 and (d == B or d % 8 == 0)]
    fitting = [d for d in aligned if footprint(d) <= vmem_budget_bytes]
    if not fitting:
        return min(aligned)
    pool = fitting
    if prefer_multi_step:
        multi = [d for d in fitting if B // d >= 2]
        if multi:
            pool = multi
    return max(pool)


def bahdanau_attention(encode_state, decode_hid_state, w_encode, w_decode, v):
    """encode_state: [B, S, M], decode_hid_state: [B, M]
       w_encode/w_decode: [M, A] (pre-transposed), v: [A, 1]
       returns (scores [B, S, 1], context [B, M])"""
    B, S, M = encode_state.shape
    A = w_encode.shape[1]
    dtype = encode_state.dtype
    itemsize = jnp.dtype(dtype).itemsize
    v_row = v.reshape(1, A)

    # Derive VMEM limits from the actual chip (64 MiB/TC on v7x, 128 MiB on
    # v5e/v6e) and leave headroom; block sizing uses a fraction of that limit.
    vmem_cap = _vmem_capacity_bytes()
    vmem_limit = min(48 << 20, (vmem_cap * 5) // 8)
    block_budget = (vmem_limit * 3) // 4

    # >=2 grid steps only pays off when the 'parallel' axis can be sharded
    # across 2 TensorCores (v7x); on single-TC chips the grid is a serial loop.
    prefer_multi_step = _num_tensorcores() >= 2

    Bt = _pick_batch_block(B, S, M, A, itemsize, block_budget, prefer_multi_step)
    grid = (B // Bt,)

    cost = pl.CostEstimate(
        flops=2 * B * S * M * A + 2 * B * M * A + 2 * B * S * A + 2 * B * S * M,
        transcendentals=B * S * A + B * S,
        bytes_accessed=itemsize * (B * S * M + B * M + 2 * M * A + A
                                   + B * S + B * M),
    )

    grid_spec = pltpu.PrefetchScalarGridSpec(
        num_scalar_prefetch=0,
        grid=grid,
        in_specs=[
            pl.BlockSpec((Bt, S, M), lambda b: (b, 0, 0)),   # encode_state
            pl.BlockSpec((Bt, M), lambda b: (b, 0)),         # decode_hid_state
            pl.BlockSpec((M, A), lambda b: (0, 0)),          # W_encode^T
            pl.BlockSpec((M, A), lambda b: (0, 0)),          # W_decode^T
            pl.BlockSpec((1, A), lambda b: (0, 0)),          # V as a row
        ],
        out_specs=[
            pl.BlockSpec((Bt, S), lambda b: (b, 0)),         # scores (lane-dense)
            pl.BlockSpec((Bt, M), lambda b: (b, 0)),         # context
        ],
    )

    scores, ctx = pl.pallas_call(
        _bahdanau_kernel,
        out_shape=(
            jax.ShapeDtypeStruct((B, S), dtype),
            jax.ShapeDtypeStruct((B, M), dtype),
        ),
        grid_spec=grid_spec,
        cost_estimate=cost,
        compiler_params=pltpu.CompilerParams(
            dimension_semantics=("parallel",),
            vmem_limit_bytes=vmem_limit,
        ),
    )(encode_state, decode_hid_state, w_encode, w_decode, v_row)

    # Caller-facing shape matches the PyTorch module: scores [B, S, 1].
    return scores.reshape(B, S, 1), ctx


def _reference(encode_state, decode_hid_state, w_encode, w_decode, v):
    # Pure-JAX reference mirroring the PyTorch forward.
    d = decode_hid_state[:, None, :]                       # [B, 1, M]
    h = jnp.tanh(encode_state @ w_encode + d @ w_decode)   # [B, S, A]
    scores = h @ v                                         # [B, S, 1]
    probs = jax.nn.softmax(scores, axis=1)
    ctx = jnp.sum(probs * encode_state, axis=1)            # [B, M]
    return scores, ctx


if __name__ == "__main__":
    B, S = 16, 8
    model_size, atten_size = 32, 32

    key = jax.random.PRNGKey(0)
    k_enc, k_dec, k_we, k_wd, k_v = jax.random.split(key, 5)

    encode_state = jax.random.normal(k_enc, (B, S, model_size), jnp.float32)
    decode_hid_state = jax.random.normal(k_dec, (B, model_size), jnp.float32)

    # PyTorch Linear weights are [out, in]; stored pre-transposed as [in, out].
    w_encode = 0.1 * jax.random.normal(k_we, (model_size, atten_size), jnp.float32)
    w_decode = 0.1 * jax.random.normal(k_wd, (model_size, atten_size), jnp.float32)
    v = 0.1 * jax.random.normal(k_v, (atten_size, 1), jnp.float32)

    scores, ctx = bahdanau_attention(
        encode_state, decode_hid_state, w_encode, w_decode, v)
    jax.block_until_ready((scores, ctx))

    ref_scores, ref_ctx = _reference(
        encode_state, decode_hid_state, w_encode, w_decode, v)
    assert scores.shape == (B, S, 1) and ctx.shape == (B, model_size)
    # Exact (non-approx) softmax reciprocal: both outputs should match tightly.
    assert jnp.allclose(scores, ref_scores, atol=1e-4, rtol=1e-4)
    assert jnp.allclose(ctx, ref_ctx, atol=1e-4, rtol=1e-4)

    print("KERNEL_OK")
</pallas_src>

<mosaic_0001>
module attributes {stable_mosaic.version = 11 : i64} {
  func.func @_bahdanau_kernel(%arg0: i32, %arg1: memref<16x8x32xf32, #tpu.memory_space<vmem>>, %arg2: memref<16x32xf32, #tpu.memory_space<vmem>>, %arg3: memref<32x32xf32, #tpu.memory_space<vmem>>, %arg4: memref<32x32xf32, #tpu.memory_space<vmem>>, %arg5: memref<1x32xf32, #tpu.memory_space<vmem>>, %arg6: memref<16x8xf32, #tpu.memory_space<vmem>>, %arg7: memref<16x32xf32, #tpu.memory_space<vmem>>) attributes {dimension_semantics = [#tpu.dimension_semantics<parallel>], iteration_bounds = array<i64: 1>, scalar_prefetch = 0 : i64, scratch_operands = 0 : i64, tpu.core_type = #tpu.core_type<tc>, window_params = [{transform_indices = @transform_0, window_bounds = array<i64: 16, 8, 32>}, {transform_indices = @transform_1, window_bounds = array<i64: 16, 32>}, {pipeline_mode = #tpu.pipeline_mode<synchronous>, transform_indices = @transform_2, window_bounds = array<i64: 32, 32>}, {pipeline_mode = #tpu.pipeline_mode<synchronous>, transform_indices = @transform_3, window_bounds = array<i64: 32, 32>}, {pipeline_mode = #tpu.pipeline_mode<synchronous>, transform_indices = @transform_4, window_bounds = array<i64: 1, 32>}, {transform_indices = @transform_5, window_bounds = array<i64: 16, 8>}, {transform_indices = @transform_6, window_bounds = array<i64: 16, 32>}]} {
    %c0 = arith.constant 0 : index
    %c0_0 = arith.constant 0 : index
    %c0_1 = arith.constant 0 : index
    %0 = vector.load %arg1[%c0, %c0_0, %c0_1] : memref<16x8x32xf32, #tpu.memory_space<vmem>>, vector<16x8x32xf32>
    %1 = vector.shape_cast %0 : vector<16x8x32xf32> to vector<128x32xf32>
    %c0_2 = arith.constant 0 : index
    %c0_3 = arith.constant 0 : index
    %2 = vector.load %arg3[%c0_2, %c0_3] : memref<32x32xf32, #tpu.memory_space<vmem>>, vector<32x32xf32>
    %cst = arith.constant dense<0.000000e+00> : vector<128x32xf32>
    %3 = tpu.matmul %1, %2, %cst {dimension_numbers = #tpu.dot_dimension_numbers<[1], [0], [0], [1], [0, 0, 1, 1], [], []>} : vector<128x32xf32>, vector<32x32xf32>, vector<128x32xf32> -> vector<128x32xf32>
    %4 = vector.shape_cast %3 : vector<128x32xf32> to vector<16x8x32xf32>
    %c0_4 = arith.constant 0 : index
    %c0_5 = arith.constant 0 : index
    %5 = vector.load %arg2[%c0_4, %c0_5] : memref<16x32xf32, #tpu.memory_space<vmem>>, vector<16x32xf32>
    %c0_6 = arith.constant 0 : index
    %c0_7 = arith.constant 0 : index
    %6 = vector.load %arg4[%c0_6, %c0_7] : memref<32x32xf32, #tpu.memory_space<vmem>>, vector<32x32xf32>
    %cst_8 = arith.constant dense<0.000000e+00> : vector<16x32xf32>
    %7 = tpu.matmul %5, %6, %cst_8 {dimension_numbers = #tpu.dot_dimension_numbers<[1], [0], [0], [1], [0, 0, 1, 1], [], []>} : vector<16x32xf32>, vector<32x32xf32>, vector<16x32xf32> -> vector<16x32xf32>
    %8 = vector.shape_cast %7 : vector<16x32xf32> to vector<16x1x32xf32>
    %9 = vector.broadcast %8 : vector<16x1x32xf32> to vector<16x8x32xf32>
    %10 = arith.addf %4, %9 : vector<16x8x32xf32>
    %11 = math.tanh %10 : vector<16x8x32xf32>
    %c0_9 = arith.constant 0 : index
    %c0_10 = arith.constant 0 : index
    %12 = vector.load %arg5[%c0_9, %c0_10] : memref<1x32xf32, #tpu.memory_space<vmem>>, vector<1x32xf32>
    %13 = vector.shape_cast %12 : vector<1x32xf32> to vector<1x1x32xf32>
    %14 = vector.broadcast %13 : vector<1x1x32xf32> to vector<16x8x32xf32>
    %15 = arith.mulf %11, %14 : vector<16x8x32xf32>
    %cst_11 = arith.constant dense<0.000000e+00> : vector<16x8xf32>
    %16 = vector.multi_reduction <add>, %15, %cst_11 [2] : vector<16x8x32xf32> to vector<16x8xf32>
    %c0_12 = arith.constant 0 : index
    %c0_13 = arith.constant 0 : index
    %17 = vector.load %arg6[%c0_12, %c0_13] : memref<16x8xf32, #tpu.memory_space<vmem>>, vector<16x8xf32>
    tpu.vector_store %arg6[%c0_12, %c0_13], %16 {strides = array<i32>} : memref<16x8xf32, #tpu.memory_space<vmem>>, vector<16x8xf32>,
    %cst_14 = arith.constant dense<0xFF800000> : vector<16xf32>
    %18 = vector.multi_reduction <maximumf>, %16, %cst_14 [1] : vector<16x8xf32> to vector<16xf32>
    %19 = vector.shape_cast %18 : vector<16xf32> to vector<16x1xf32>
    %20 = vector.broadcast %19 : vector<16x1xf32> to vector<16x8xf32>
    %21 = arith.subf %16, %20 : vector<16x8xf32>
    %22 = math.exp %21 : vector<16x8xf32>
    %cst_15 = arith.constant dense<0.000000e+00> : vector<16xf32>
    %23 = vector.multi_reduction <add>, %22, %cst_15 [1] : vector<16x8xf32> to vector<16xf32>
    %24 = vector.shape_cast %23 : vector<16xf32> to vector<16x1xf32>
    %25 = tpu.reciprocal %24 : vector<16x1xf32> -> vector<16x1xf32>
    %26 = vector.broadcast %25 : vector<16x1xf32> to vector<16x8xf32>
    %27 = arith.mulf %22, %26 : vector<16x8xf32>
    %28 = vector.shape_cast %27 : vector<16x8xf32> to vector<16x8x1xf32>
    %29 = vector.broadcast %28 : vector<16x8x1xf32> to vector<16x8x32xf32>
    %30 = arith.mulf %29, %0 : vector<16x8x32xf32>
    %cst_16 = arith.constant dense<0.000000e+00> : vector<16x32xf32>
    %31 = vector.multi_reduction <add>, %30, %cst_16 [1] : vector<16x8x32xf32> to vector<16x32xf32>
    %c0_17 = arith.constant 0 : index
    %c0_18 = arith.constant 0 : index
    %32 = vector.load %arg7[%c0_17, %c0_18] : memref<16x32xf32, #tpu.memory_space<vmem>>, vector<16x32xf32>
    tpu.vector_store %arg7[%c0_17, %c0_18], %31 {strides = array<i32>} : memref<16x32xf32, #tpu.memory_space<vmem>>, vector<16x32xf32>,
    return
  }
  func.func @transform_0(%arg0: i32) -> (i32, i32, i32) {
    %c0_i32 = arith.constant 0 : i32
    %c0_i32_0 = arith.constant 0 : i32
    %c0_i32_1 = arith.constant 0 : i32
    return %arg0, %c0_i32, %c0_i32_0 : i32, i32, i32
  }
  func.func @transform_1(%arg0: i32) -> (i32, i32) {
    %c0_i32 = arith.constant 0 : i32
    %c0_i32_0 = arith.constant 0 : i32
    return %arg0, %c0_i32 : i32, i32
  }
  func.func @transform_2(%arg0: i32) -> (i32, i32) {
    %c0_i32 = arith.constant 0 : i32
    %c0_i32_0 = arith.constant 0 : i32
    %c0_i32_1 = arith.constant 0 : i32
    return %c0_i32, %c0_i32_0 : i32, i32
  }
  func.func @transform_3(%arg0: i32) -> (i32, i32) {
    %c0_i32 = arith.constant 0 : i32
    %c0_i32_0 = arith.constant 0 : i32
    %c0_i32_1 = arith.constant 0 : i32
    return %c0_i32, %c0_i32_0 : i32, i32
  }
  func.func @transform_4(%arg0: i32) -> (i32, i32) {
    %c0_i32 = arith.constant 0 : i32
    %c0_i32_0 = arith.constant 0 : i32
    %c0_i32_1 = arith.constant 0 : i32
    return %c0_i32, %c0_i32_0 : i32, i32
  }
  func.func @transform_5(%arg0: i32) -> (i32, i32) {
    %c0_i32 = arith.constant 0 : i32
    %c0_i32_0 = arith.constant 0 : i32
    return %arg0, %c0_i32 : i32, i32
  }
  func.func @transform_6(%arg0: i32) -> (i32, i32) {
    %c0_i32 = arith.constant 0 : i32
    %c0_i32_0 = arith.constant 0 : i32
    return %arg0, %c0_i32 : i32, i32
  }
}

</mosaic_0001>

<llo_original>
// kernel: tpu_custom_call.1
$region0: #{tpu_custom_call.1}
  #allocation0 [shape = 'u32[]', space=smem, size = 0x4, offset = 0x4, fixed_abs, tag = 'smem constant byte address 0x4 - core index']
  #allocation1 [shape = 'u32[144,128]{1,0:T(1,128)}', space=vmem, size = 0x12000, scoped, tag = 'internal scratch']
  %s0 = inlined_call_operand.hbm [shape: f32[16,8,32], index: 0, kind: input, shape index: {}]
  %s1 = inlined_call_operand.hbm [shape: f32[16,32], index: 1, kind: input, shape index: {}]
  %s2 = inlined_call_operand.hbm [shape: f32[32,32], index: 2, kind: input, shape index: {}]
  %s3 = inlined_call_operand.hbm [shape: f32[32,32], index: 3, kind: input, shape index: {}]
  %s4 = inlined_call_operand.vmem [shape: f32[1,32], index: 4, kind: input, shape index: {}]
  %s5 = inlined_call_operand.vmem [shape: f32[16,8], index: 5, kind: output, shape index: {0}]
  %s6 = inlined_call_operand.hbm [shape: f32[16,32], index: 6, kind: output, shape index: {1}]
  %7 = xla_tuple %s5, %s6
  %s8 = sld [smem:[#allocation0]]
  $region54: #{tpu_custom_call.1} parent=0
    _
  %s10 = ssub.s32 1, %s8
  %s11 = scalar_select 0, %s10, %s8
  $region1: #{tpu_custom_call.1} parent=0
    #allocation2 [shape = 'u8[65536]{0}', space=vmem, size = 0x10000, scoped, tag = 'input window, operand 0, single buffered']
    #allocation3 [shape = 's32[1]{0}', space=sflag, size = 0x4, scoped, tag = 'scoped memory for tpu_custom_call.1']
    #allocation4 [shape = 's32[1]{0}', space=sflag, size = 0x4, scoped, tag = 'scoped memory for tpu_custom_call.1']
    #allocation5 [shape = 'u8[8192]{0}', space=vmem, size = 0x2000, scoped, tag = 'input window, operand 1, single buffered']
    #allocation6 [shape = 's32[1]{0}', space=sflag, size = 0x4, scoped, tag = 'scoped memory for tpu_custom_call.1']
    #allocation7 [shape = 'u8[16384]{0}', space=vmem, size = 0x4000, scoped, tag = 'input window, operand 2, single buffered']
    #allocation8 [shape = 'u8[16384]{0}', space=vmem, size = 0x4000, scoped, tag = 'input window, operand 3, single buffered']
    #allocation9 [shape = 's32[1]{0}', space=sflag, size = 0x4, scoped, tag = 'scoped memory for tpu_custom_call.1']
    #allocation10 [shape = 'u8[8192]{0}', space=vmem, size = 0x2000, scoped, tag = 'output window, operand 1, single buffered']
    %12 = vsyncpa [#allocation3], 0
    %13 = vsyncpa [#allocation6], 0
    %14 = vsyncpa [#allocation9], 0
    %15 = vsyncpa [#allocation4], 0
    // Predicated region
    $region2: #{tpu_custom_call.1} parent=1 // pred_check
      _
    $region3: #{tpu_custom_call.1} parent=1 // pred_check_branch
      %17 = sbr.rel (0) target = $region5
    $region4: #{tpu_custom_call.1} parent=1 // pred_region
      %s19 = ssub.s32 2048, 2048
      %20 = vsyncadd [#allocation3], %s19
      %s21 = sshll.u32 [#allocation2], 4
      %s22 = int_to_ptr.vmem [resolvable:$true] %s21
      %27 = dma.hbm_to_vmem [thread:$0]  %s0, 2048, %s22, [#allocation3], 128, 128, 8
    $region5: #{tpu_custom_call.1} parent=1 // pred_fallthru
      _
    // Predicated region
    $region6: #{tpu_custom_call.1} parent=1 // pred_check
      _
    $region7: #{tpu_custom_call.1} parent=1 // pred_check_branch
      %29 = sbr.rel (0) target = $region9
    $region8: #{tpu_custom_call.1} parent=1 // pred_region
      %s31 = ssub.s32 256, 256
      %32 = vsyncadd [#allocation6], %s31
      %s33 = sshll.u32 [#allocation5], 4
      %s34 = int_to_ptr.vmem [resolvable:$true] %s33
      %39 = dma.hbm_to_vmem [thread:$0]  %s1, 256, %s34, [#allocation6], 128, 128, 8
    $region9: #{tpu_custom_call.1} parent=1 // pred_fallthru
      _
    // Predicated region
    $region10: #{tpu_custom_call.1} parent=1 // pred_check
      _
    $region11: #{tpu_custom_call.1} parent=1 // pred_check_branch
      %41 = sbr.rel (0) target = $region13
    $region12: #{tpu_custom_call.1} parent=1 // pred_region
      %s43 = ssub.s32 512, 512
      %44 = vsyncadd [#allocation6], %s43
      %s45 = sshll.u32 [#allocation7], 4
      %s46 = int_to_ptr.vmem [resolvable:$true] %s45
      %51 = dma.hbm_to_vmem [thread:$0]  %s2, 512, %s46, [#allocation6], 128, 128, 8
    $region13: #{tpu_custom_call.1} parent=1 // pred_fallthru
      _
    // Predicated region
    $region14: #{tpu_custom_call.1} parent=1 // pred_check
      _
    $region15: #{tpu_custom_call.1} parent=1 // pred_check_branch
      %53 = sbr.rel (0) target = $region17
    $region16: #{tpu_custom_call.1} parent=1 // pred_region
      %s55 = ssub.s32 512, 512
      %56 = vsyncadd [#allocation9], %s55
      %s57 = sshll.u32 [#allocation8], 4
      %s58 = int_to_ptr.vmem [resolvable:$true] %s57
      %63 = dma.hbm_to_vmem [thread:$0]  %s3, 512, %s58, [#allocation9], 128, 128, 8
    $region17: #{tpu_custom_call.1} parent=1 // pred_fallthru
      _
    // Predicated region
    $region18: #{tpu_custom_call.1} parent=1 // pred_check
      _
    $region19: #{tpu_custom_call.1} parent=1 // pred_check_branch
      %65 = sbr.rel (0) target = $region21
    $region20: #{tpu_custom_call.1} parent=1 // pred_region
      _
    $region21: #{tpu_custom_call.1} parent=1 // pred_fallthru
      _
    // Predicated region
    $region22: #{tpu_custom_call.1} parent=1 // pred_check
      _
    $region23: #{tpu_custom_call.1} parent=1 // pred_check_branch
      %67 = sbr.rel (0) target = $region25
    $region24: #{tpu_custom_call.1} parent=1 // pred_region
      %68 = dma.done [#allocation3], 2048
    $region25: #{tpu_custom_call.1} parent=1 // pred_fallthru
      _
    // Predicated region
    $region26: #{tpu_custom_call.1} parent=1 // pred_check
      _
    $region27: #{tpu_custom_call.1} parent=1 // pred_check_branch
      %70 = sbr.rel (0) target = $region29
    $region28: #{tpu_custom_call.1} parent=1 // pred_region
      %71 = dma.done [#allocation6], 256
    $region29: #{tpu_custom_call.1} parent=1 // pred_fallthru
      _
    // Predicated region
    $region30: #{tpu_custom_call.1} parent=1 // pred_check
      _
    $region31: #{tpu_custom_call.1} parent=1 // pred_check_branch
      %73 = sbr.rel (0) target = $region33
    $region32: #{tpu_custom_call.1} parent=1 // pred_region
      %74 = dma.done [#allocation6], 512
    $region33: #{tpu_custom_call.1} parent=1 // pred_fallthru
      _
    // Predicated region
    $region34: #{tpu_custom_call.1} parent=1 // pred_check
      _
    $region35: #{tpu_custom_call.1} parent=1 // pred_check_branch
      %76 = sbr.rel (0) target = $region37
    $region36: #{tpu_custom_call.1} parent=1 // pred_region
      %77 = dma.done [#allocation9], 512
    $region37: #{tpu_custom_call.1} parent=1 // pred_fallthru
      _
    %v78 = vld [vmem:[#allocation2] sm:$0xff]
    %v79 = vld [vmem:[#allocation2 + $0x8] sm:$0xff]
    %v80 = vld [vmem:[#allocation2 + $0x10] sm:$0xff]
    %v81 = vld [vmem:[#allocation2 + $0x18] sm:$0xff]
    %v82 = vld [vmem:[#allocation2 + $0x20] sm:$0xff]
    %v83 = vld [vmem:[#allocation2 + $0x28] sm:$0xff]
    %v84 = vld [vmem:[#allocation2 + $0x30] sm:$0xff]
    %v85 = vld [vmem:[#allocation2 + $0x38] sm:$0xff]
    %v86 = vld [vmem:[#allocation2 + $0x40] sm:$0xff]
    %v87 = vld [vmem:[#allocation2 + $0x48] sm:$0xff]
    %v88 = vld [vmem:[#allocation2 + $0x50] sm:$0xff]
    %v89 = vld [vmem:[#allocation2 + $0x58] sm:$0xff]
    %v90 = vld [vmem:[#allocation2 + $0x60] sm:$0xff]
    %v91 = vld [vmem:[#allocation2 + $0x68] sm:$0xff]
    %v92 = vld [vmem:[#allocation2 + $0x70] sm:$0xff]
    %v93 = vld [vmem:[#allocation2 + $0x78] sm:$0xff]
    %v94 = vld [vmem:[#allocation7] sm:$0xff]
    %v95 = vld [vmem:[#allocation7 + $0x8] sm:$0xff]
    %v96 = vld [vmem:[#allocation7 + $0x10] sm:$0xff]
    %v97 = vld [vmem:[#allocation7 + $0x18] sm:$0xff]
    %vm98 = vcmask 261120
    %v100 = vsel %vm98, %v78, 0
    %v103 = vsel %vm98, %v79, 0
    %v106 = vsel %vm98, %v80, 0
    %v109 = vsel %vm98, %v81, 0
    %v112 = vsel %vm98, %v82, 0
    %v115 = vsel %vm98, %v83, 0
    %v118 = vsel %vm98, %v84, 0
    %v121 = vsel %vm98, %v85, 0
    %v124 = vsel %vm98, %v86, 0
    %v127 = vsel %vm98, %v87, 0
    %v130 = vsel %vm98, %v88, 0
    %v133 = vsel %vm98, %v89, 0
    %v136 = vsel %vm98, %v90, 0
    %v139 = vsel %vm98, %v91, 0
    %v142 = vsel %vm98, %v92, 0
    %v145 = vsel %vm98, %v93, 0
    %147 = vmatprep.subr.mxu0 0.0
    %148 = vmatpush1.msra.mxu0 %v94
    %149 = vmatprep.subr.mxu0 0.0
    %150 = vmatpush1.msra.mxu0 %v95
    %151 = vmatprep.subr.mxu0 0.0
    %152 = vmatpush1.msra.mxu0 %v96
    %153 = vmatprep.subr.mxu0 0.0
    %154 = vmatpush1.msra.mxu0 %v97
    %155 = vmatprep.subr.mxu0 0.0
    %156 = vmatpush1.msra.mxu0 0.0
    %157 = vmatprep.subr.mxu0 0.0
    %158 = vmatpush1.msra.mxu0 0.0
    %159 = vmatprep.subr.mxu0 0.0
    %160 = vmatpush1.msra.mxu0 0.0
    %161 = vmatprep.subr.mxu0 0.0
    %162 = vmatpush1.msra.mxu0 0.0
    %163 = vmatprep.subr.mxu0 0.0
    %164 = vmatpush1.msra.mxu0 0.0
    %165 = vmatprep.subr.mxu0 0.0
    %166 = vmatpush1.msra.mxu0 0.0
    %167 = vmatprep.subr.mxu0 0.0
    %168 = vmatpush1.msra.mxu0 0.0
    %169 = vmatprep.subr.mxu0 0.0
    %170 = vmatpush1.msra.mxu0 0.0
    %171 = vmatprep.subr.mxu0 0.0
    %172 = vmatpush1.msra.mxu0 0.0
    %173 = vmatprep.subr.mxu0 0.0
    %174 = vmatpush1.msra.mxu0 0.0
    %175 = vmatprep.subr.mxu0 0.0
    %176 = vmatpush1.msra.mxu0 0.0
    %177 = vmatprep.subr.mxu0 0.0
    %178 = vmatpush1.msra.mxu0 0.0
    %179 = vmatprep.subr.mxu0 0.0
    %180 = vmatpush1.msra.mxu0 0.0
    %181 = vmatprep.subr.mxu0 0.0
    %182 = vmatpush1.msra.mxu0 0.0
    %183 = vmatprep.subr.mxu0 0.0
    %184 = vmatpush1.msra.mxu0 0.0
    %185 = vmatprep.subr.mxu0 0.0
    %186 = vmatpush1.msra.mxu0 0.0
    %187 = vmatprep.subr.mxu0 0.0
    %188 = vmatpush1.msra.mxu0 0.0
    %189 = vmatprep.subr.mxu0 0.0
    %190 = vmatpush1.msra.mxu0 0.0
    %191 = vmatprep.subr.mxu0 0.0
    %192 = vmatpush1.msra.mxu0 0.0
    %193 = vmatprep.subr.mxu0 0.0
    %194 = vmatpush1.msra.mxu0 0.0
    %195 = vmatprep.subr.mxu0 0.0
    %196 = vmatpush1.msra.mxu0 0.0
    %197 = vmatprep.subr.mxu0 0.0
    %198 = vmatpush1.msra.mxu0 0.0
    %199 = vmatprep.subr.mxu0 0.0
    %200 = vmatpush1.msra.mxu0 0.0
    %201 = vmatprep.subr.mxu0 0.0
    %202 = vmatpush1.msra.mxu0 0.0
    %203 = vmatprep.subr.mxu0 0.0
    %204 = vmatpush1.msra.mxu0 0.0
    %205 = vmatprep.subr.mxu0 0.0
    %206 = vmatpush1.msra.mxu0 0.0
    %207 = vmatprep.subr.mxu0 0.0
    %208 = vmatpush1.msra.mxu0 0.0
    %209 = vmatprep.subr.mxu0 0.0
    %210 = vmatpush1.msra.mxu0 0.0
    %211 = vmatprep.mubr.f32.mxu0 0.0
    %212 = vmatmul.mubr.f32.gmra.mrb[0].mxu0 %v100
    %v213 = vpop.f32.mrb[0].mxu0
    %v214 = vadd.f32 0.0, %v213
    %v215 = vpop.f32.mrb[0].mxu0
    %216 = vmatprep.mubr.f32.mxu0 0.0
    %217 = vmatmul.mubr.f32.gmra.mrb[0].mxu0 %v103
    %v218 = vpop.f32.mrb[0].mxu0
    %v219 = vadd.f32 0.0, %v218
    %v220 = vpop.f32.mrb[0].mxu0
    %221 = vmatprep.mubr.f32.mxu0 0.0
    %222 = vmatmul.mubr.f32.gmra.mrb[0].mxu0 %v106
    %v223 = vpop.f32.mrb[0].mxu0
    %v224 = vadd.f32 0.0, %v223
    %v225 = vpop.f32.mrb[0].mxu0
    %226 = vmatprep.mubr.f32.mxu0 0.0
    %227 = vmatmul.mubr.f32.gmra.mrb[0].mxu0 %v109
    %v228 = vpop.f32.mrb[0].mxu0
    %v229 = vadd.f32 0.0, %v228
    %v230 = vpop.f32.mrb[0].mxu0
    %231 = vmatprep.mubr.f32.mxu0 0.0
    %232 = vmatmul.mubr.f32.gmra.mrb[0].mxu0 %v112
    %v233 = vpop.f32.mrb[0].mxu0
    %v234 = vadd.f32 0.0, %v233
    %v235 = vpop.f32.mrb[0].mxu0
    %236 = vmatprep.mubr.f32.mxu0 0.0
    %237 = vmatmul.mubr.f32.gmra.mrb[0].mxu0 %v115
    %v238 = vpop.f32.mrb[0].mxu0
    %v239 = vadd.f32 0.0, %v238
    %v240 = vpop.f32.mrb[0].mxu0
    %241 = vmatprep.mubr.f32.mxu0 0.0
    %242 = vmatmul.mubr.f32.gmra.mrb[0].mxu0 %v118
    %v243 = vpop.f32.mrb[0].mxu0
    %v244 = vadd.f32 0.0, %v243
    %v245 = vpop.f32.mrb[0].mxu0
    %246 = vmatprep.mubr.f32.mxu0 0.0
    %247 = vmatmul.mubr.f32.gmra.mrb[0].mxu0 %v121
    %v248 = vpop.f32.mrb[0].mxu0
    %v249 = vadd.f32 0.0, %v248
    %v250 = vpop.f32.mrb[0].mxu0
    %251 = vmatprep.mubr.f32.mxu0 0.0
    %252 = vmatmul.mubr.f32.gmra.mrb[0].mxu0 %v124
    %v253 = vpop.f32.mrb[0].mxu0
    %v254 = vadd.f32 0.0, %v253
    %v255 = vpop.f32.mrb[0].mxu0
    %256 = vmatprep.mubr.f32.mxu0 0.0
    %257 = vmatmul.mubr.f32.gmra.mrb[0].mxu0 %v127
    %v258 = vpop.f32.mrb[0].mxu0
    %v259 = vadd.f32 0.0, %v258
    %v260 = vpop.f32.mrb[0].mxu0
    %261 = vmatprep.mubr.f32.mxu0 0.0
    %262 = vmatmul.mubr.f32.gmra.mrb[0].mxu0 %v130
    %v263 = vpop.f32.mrb[0].mxu0
    %v264 = vadd.f32 0.0, %v263
    %v265 = vpop.f32.mrb[0].mxu0
    %266 = vmatprep.mubr.f32.mxu0 0.0
    %267 = vmatmul.mubr.f32.gmra.mrb[0].mxu0 %v133
    %v268 = vpop.f32.mrb[0].mxu0
    %v269 = vadd.f32 0.0, %v268
    %v270 = vpop.f32.mrb[0].mxu0
    %271 = vmatprep.mubr.f32.mxu0 0.0
    %272 = vmatmul.mubr.f32.gmra.mrb[0].mxu0 %v136
    %v273 = vpop.f32.mrb[0].mxu0
    %v274 = vadd.f32 0.0, %v273
    %v275 = vpop.f32.mrb[0].mxu0
    %276 = vmatprep.mubr.f32.mxu0 0.0
    %277 = vmatmul.mubr.f32.gmra.mrb[0].mxu0 %v139
    %v278 = vpop.f32.mrb[0].mxu0
    %v279 = vadd.f32 0.0, %v278
    %v280 = vpop.f32.mrb[0].mxu0
    %281 = vmatprep.mubr.f32.mxu0 0.0
    %282 = vmatmul.mubr.f32.gmra.mrb[0].mxu0 %v142
    %v283 = vpop.f32.mrb[0].mxu0
    %v284 = vadd.f32 0.0, %v283
    %v285 = vpop.f32.mrb[0].mxu0
    %286 = vmatprep.mubr.f32.mxu0 0.0
    %287 = vmatmul.mubr.f32.gmra.mrb[0].mxu0 %v145
    %v288 = vpop.f32.mrb[0].mxu0
    %v289 = vadd.f32 0.0, %v288
    %v290 = vpop.f32.mrb[0].mxu0
    %291 = vdwg.mxu0
    %v292 = vld [vmem:[#allocation5] sm:$0xff]
    %v293 = vld [vmem:[#allocation5 + $0x8] sm:$0xff]
    %v294 = vld [vmem:[#allocation8] sm:$0xff]
    %v295 = vld [vmem:[#allocation8 + $0x8] sm:$0xff]
    %v296 = vld [vmem:[#allocation8 + $0x10] sm:$0xff]
    %v297 = vld [vmem:[#allocation8 + $0x18] sm:$0xff]
    %v299 = vsel %vm98, %v292, 0
    %v302 = vsel %vm98, %v293, 0
    %304 = vmatprep.subr.mxu0 0.0
    %305 = vmatpush1.msra.mxu0 %v294
    %306 = vmatprep.subr.mxu0 0.0
    %307 = vmatpush1.msra.mxu0 %v295
    %308 = vmatprep.subr.mxu0 0.0
    %309 = vmatpush1.msra.mxu0 %v296
    %310 = vmatprep.subr.mxu0 0.0
    %311 = vmatpush1.msra.mxu0 %v297
    %312 = vmatprep.subr.mxu0 0.0
    %313 = vmatpush1.msra.mxu0 0.0
    %314 = vmatprep.subr.mxu0 0.0
    %315 = vmatpush1.msra.mxu0 0.0
    %316 = vmatprep.subr.mxu0 0.0
    %317 = vmatpush1.msra.mxu0 0.0
    %318 = vmatprep.subr.mxu0 0.0
    %319 = vmatpush1.msra.mxu0 0.0
    %320 = vmatprep.subr.mxu0 0.0
    %321 = vmatpush1.msra.mxu0 0.0
    %322 = vmatprep.subr.mxu0 0.0
    %323 = vmatpush1.msra.mxu0 0.0
    %324 = vmatprep.subr.mxu0 0.0
    %325 = vmatpush1.msra.mxu0 0.0
    %326 = vmatprep.subr.mxu0 0.0
    %327 = vmatpush1.msra.mxu0 0.0
    %328 = vmatprep.subr.mxu0 0.0
    %329 = vmatpush1.msra.mxu0 0.0
    %330 = vmatprep.subr.mxu0 0.0
    %331 = vmatpush1.msra.mxu0 0.0
    %332 = vmatprep.subr.mxu0 0.0
    %333 = vmatpush1.msra.mxu0 0.0
    %334 = vmatprep.subr.mxu0 0.0
    %335 = vmatpush1.msra.mxu0 0.0
    %336 = vmatprep.subr.mxu0 0.0
    %337 = vmatpush1.msra.mxu0 0.0
    %338 = vmatprep.subr.mxu0 0.0
    %339 = vmatpush1.msra.mxu0 0.0
    %340 = vmatprep.subr.mxu0 0.0
    %341 = vmatpush1.msra.mxu0 0.0
    %342 = vmatprep.subr.mxu0 0.0
    %343 = vmatpush1.msra.mxu0 0.0
    %344 = vmatprep.subr.mxu0 0.0
    %345 = vmatpush1.msra.mxu0 0.0
    %346 = vmatprep.subr.mxu0 0.0
    %347 = vmatpush1.msra.mxu0 0.0
    %348 = vmatprep.subr.mxu0 0.0
    %349 = vmatpush1.msra.mxu0 0.0
    %350 = vmatprep.subr.mxu0 0.0
    %351 = vmatpush1.msra.mxu0 0.0
    %352 = vmatprep.subr.mxu0 0.0
    %353 = vmatpush1.msra.mxu0 0.0
    %354 = vmatprep.subr.mxu0 0.0
    %355 = vmatpush1.msra.mxu0 0.0
    %356 = vmatprep.subr.mxu0 0.0
    %357 = vmatpush1.msra.mxu0 0.0
    %358 = vmatprep.subr.mxu0 0.0
    %359 = vmatpush1.msra.mxu0 0.0
    %360 = vmatprep.subr.mxu0 0.0
    %361 = vmatpush1.msra.mxu0 0.0
    %362 = vmatprep.subr.mxu0 0.0
    %363 = vmatpush1.msra.mxu0 0.0
    %364 = vmatprep.subr.mxu0 0.0
    %365 = vmatpush1.msra.mxu0 0.0
    %366 = vmatprep.subr.mxu0 0.0
    %367 = vmatpush1.msra.mxu0 0.0
    %368 = vmatprep.mubr.f32.mxu0 0.0
    %369 = vmatmul.mubr.f32.gmra.mrb[0].mxu0 %v299
    %v370 = vpop.f32.mrb[0].mxu0
    %v371 = vadd.f32 0.0, %v370
    %v372 = vpop.f32.mrb[0].mxu0
    %373 = vmatprep.mubr.f32.mxu0 0.0
    %374 = vmatmul.mubr.f32.gmra.mrb[0].mxu0 %v302
    %v375 = vpop.f32.mrb[0].mxu0
    %v376 = vadd.f32 0.0, %v375
    %v377 = vpop.f32.mrb[0].mxu0
    %378 = vdwg.mxu0
    %v381 = vcombine.high %v371, %v371
    %v383 = vunpack.c.l.s4 1966171168
    %v384 = vunpack.c.0.s8 %v383
    %v385 = vlaneseq
    %v386 = vshrl.u32 %v385, 7
    %v387 = vsub.s32 %v384, %v386
    %v388 = vrot.slane %v371, %v387
    %v390 = vunpack.c.l.s4 1966171168
    %v391 = vunpack.c.0.s8 %v390
    %v392 = vlaneseq
    %v393 = vshrl.u32 %v392, 7
    %v394 = vsub.s32 %v391, %v393
    %v395 = vrot.slane %v381, %v394
    %v396 = vcombine.high %v388, %v388
    %v397 = vcombine.high %v395, %v395
    %v399 = vunpack.c.l.s4 1966171168
    %v400 = vunpack.c.0.s8 %v399
    %v401 = vlaneseq
    %v402 = vshrl.u32 %v401, 7
    %v403 = vsub.s32 %v400, %v402
    %v404 = vrot.slane %v388, %v403
    %v406 = vunpack.c.l.s4 1966171168
    %v407 = vunpack.c.0.s8 %v406
    %v408 = vlaneseq
    %v409 = vshrl.u32 %v408, 7
    %v410 = vsub.s32 %v407, %v409
    %v411 = vrot.slane %v395, %v410
    %v413 = vunpack.c.l.s4 1966171168
    %v414 = vunpack.c.0.s8 %v413
    %v415 = vlaneseq
    %v416 = vshrl.u32 %v415, 7
    %v417 = vsub.s32 %v414, %v416
    %v418 = vrot.slane %v396, %v417
    %v420 = vunpack.c.l.s4 1966171168
    %v421 = vunpack.c.0.s8 %v420
    %v422 = vlaneseq
    %v423 = vshrl.u32 %v422, 7
    %v424 = vsub.s32 %v421, %v423
    %v425 = vrot.slane %v397, %v424
    %v426 = vcombine.high %v404, %v404
    %v427 = vcombine.high %v411, %v411
    %v428 = vcombine.high %v418, %v418
    %v429 = vcombine.high %v425, %v425
    %v430 = vcombine.high %v376, %v376
    %v432 = vunpack.c.l.s4 1966171168
    %v433 = vunpack.c.0.s8 %v432
    %v434 = vlaneseq
    %v435 = vshrl.u32 %v434, 7
    %v436 = vsub.s32 %v433, %v435
    %v437 = vrot.slane %v376, %v436
    %v439 = vunpack.c.l.s4 1966171168
    %v440 = vunpack.c.0.s8 %v439
    %v441 = vlaneseq
    %v442 = vshrl.u32 %v441, 7
    %v443 = vsub.s32 %v440, %v442
    %v444 = vrot.slane %v430, %v443
    %v445 = vcombine.high %v437, %v437
    %v446 = vcombine.high %v444, %v444
    %v448 = vunpack.c.l.s4 1966171168
    %v449 = vunpack.c.0.s8 %v448
    %v450 = vlaneseq
    %v451 = vshrl.u32 %v450, 7
    %v452 = vsub.s32 %v449, %v451
    %v453 = vrot.slane %v437, %v452
    %v455 = vunpack.c.l.s4 1966171168
    %v456 = vunpack.c.0.s8 %v455
    %v457 = vlaneseq
    %v458 = vshrl.u32 %v457, 7
    %v459 = vsub.s32 %v456, %v458
    %v460 = vrot.slane %v444, %v459
    %v462 = vunpack.c.l.s4 1966171168
    %v463 = vunpack.c.0.s8 %v462
    %v464 = vlaneseq
    %v465 = vshrl.u32 %v464, 7
    %v466 = vsub.s32 %v463, %v465
    %v467 = vrot.slane %v445, %v466
    %v469 = vunpack.c.l.s4 1966171168
    %v470 = vunpack.c.0.s8 %v469
    %v471 = vlaneseq
    %v472 = vshrl.u32 %v471, 7
    %v473 = vsub.s32 %v470, %v472
    %v474 = vrot.slane %v446, %v473
    %v475 = vcombine.high %v453, %v453
    %v476 = vcombine.high %v460, %v460
    %v477 = vcombine.high %v467, %v467
    %v478 = vcombine.high %v474, %v474
    %v479 = vlaneseq
    %v480 = vshrl.u32 %v479, 7
    %v481 = vsub.s32 0, %v480
    %v482 = vrot.slane %v404, %v481
    %v483 = vlaneseq
    %v484 = vshrl.u32 %v483, 7
    %v485 = vsub.s32 0, %v484
    %v486 = vrot.slane %v418, %v485
    %v487 = vlaneseq
    %v488 = vshrl.u32 %v487, 7
    %v489 = vsub.s32 0, %v488
    %v490 = vrot.slane %v426, %v489
    %v491 = vlaneseq
    %v492 = vshrl.u32 %v491, 7
    %v493 = vsub.s32 0, %v492
    %v494 = vrot.slane %v428, %v493
    %v495 = vlaneseq
    %v496 = vshrl.u32 %v495, 7
    %v497 = vsub.s32 0, %v496
    %v498 = vrot.slane %v411, %v497
    %v499 = vlaneseq
    %v500 = vshrl.u32 %v499, 7
    %v501 = vsub.s32 0, %v500
    %v502 = vrot.slane %v425, %v501
    %v503 = vlaneseq
    %v504 = vshrl.u32 %v503, 7
    %v505 = vsub.s32 0, %v504
    %v506 = vrot.slane %v427, %v505
    %v507 = vlaneseq
    %v508 = vshrl.u32 %v507, 7
    %v509 = vsub.s32 0, %v508
    %v510 = vrot.slane %v429, %v509
    %v511 = vlaneseq
    %v512 = vshrl.u32 %v511, 7
    %v513 = vsub.s32 0, %v512
    %v514 = vrot.slane %v453, %v513
    %v515 = vlaneseq
    %v516 = vshrl.u32 %v515, 7
    %v517 = vsub.s32 0, %v516
    %v518 = vrot.slane %v467, %v517
    %v519 = vlaneseq
    %v520 = vshrl.u32 %v519, 7
    %v521 = vsub.s32 0, %v520
    %v522 = vrot.slane %v475, %v521
    %v523 = vlaneseq
    %v524 = vshrl.u32 %v523, 7
    %v525 = vsub.s32 0, %v524
    %v526 = vrot.slane %v477, %v525
    %v527 = vlaneseq
    %v528 = vshrl.u32 %v527, 7
    %v529 = vsub.s32 0, %v528
    %v530 = vrot.slane %v460, %v529
    %v531 = vlaneseq
    %v532 = vshrl.u32 %v531, 7
    %v533 = vsub.s32 0, %v532
    %v534 = vrot.slane %v474, %v533
    %v535 = vlaneseq
    %v536 = vshrl.u32 %v535, 7
    %v537 = vsub.s32 0, %v536
    %v538 = vrot.slane %v476, %v537
    %v539 = vlaneseq
    %v540 = vshrl.u32 %v539, 7
    %v541 = vsub.s32 0, %v540
    %v542 = vrot.slane %v478, %v541
    %v559 = vadd.f32 %v214, %v482
    %v560 = vadd.f32 %v219, %v486
    %v561 = vadd.f32 %v224, %v490
    %v562 = vadd.f32 %v229, %v494
    %v563 = vadd.f32 %v234, %v498
    %v564 = vadd.f32 %v239, %v502
    %v565 = vadd.f32 %v244, %v506
    %v566 = vadd.f32 %v249, %v510
    %v567 = vadd.f32 %v254, %v514
    %v568 = vadd.f32 %v259, %v518
    %v569 = vadd.f32 %v264, %v522
    %v570 = vadd.f32 %v269, %v526
    %v571 = vadd.f32 %v274, %v530
    %v572 = vadd.f32 %v279, %v534
    %v573 = vadd.f32 %v284, %v538
    %v574 = vadd.f32 %v289, %v542
    %v575 = vtanh.pop %v559
    %v576 = vtanh.pop %v560
    %v577 = vtanh.pop %v561
    %v578 = vtanh.pop %v562
    %v579 = vtanh.pop %v563
    %v580 = vtanh.pop %v564
    %v581 = vtanh.pop %v565
    %v582 = vtanh.pop %v566
    %v583 = vtanh.pop %v567
    %v584 = vtanh.pop %v568
    %v585 = vtanh.pop %v569
    %v586 = vtanh.pop %v570
    %v587 = vtanh.pop %v571
    %v588 = vtanh.pop %v572
    %v589 = vtanh.pop %v573
    %v590 = vtanh.pop %v574
    %v591 = vld [vmem:[%s4] sm:$0x1]
    %v593 = vlaneseq
    %v594 = vshrl.u32 %v593, 7
    %v595 = vsub.s32 0, %v594
    %v596 = vrot.slane %v591, %v595
    %v598 = vmul.f32 %v575, %v596
    %v599 = vmul.f32 %v576, %v596
    %v600 = vmul.f32 %v577, %v596
    %v601 = vmul.f32 %v578, %v596
    %v602 = vmul.f32 %v579, %v596
    %v603 = vmul.f32 %v580, %v596
    %v604 = vmul.f32 %v581, %v596
    %v605 = vmul.f32 %v582, %v596
    %v606 = vmul.f32 %v583, %v596
    %v607 = vmul.f32 %v584, %v596
    %v608 = vmul.f32 %v585, %v596
    %v609 = vmul.f32 %v586, %v596
    %v610 = vmul.f32 %v587, %v596
    %v611 = vmul.f32 %v588, %v596
    %v612 = vmul.f32 %v589, %v596
    %v613 = vmul.f32 %v590, %v596
    %v614 = vsel %vm98, %v598, 0.0
    %615 = vadd.xlane.f32.xlu0 %v614
    %v616 = vpop.xlane.xlu0 %615
    %v617 = vsel %vm98, %v599, 0.0
    %618 = vadd.xlane.f32.xlu0 %v617
    %v619 = vpop.xlane.xlu0 %618
    %v620 = vsel %vm98, %v600, 0.0
    %621 = vadd.xlane.f32.xlu0 %v620
    %v622 = vpop.xlane.xlu0 %621
    %v623 = vsel %vm98, %v601, 0.0
    %624 = vadd.xlane.f32.xlu0 %v623
    %v625 = vpop.xlane.xlu0 %624
    %v626 = vsel %vm98, %v602, 0.0
    %627 = vadd.xlane.f32.xlu0 %v626
    %v628 = vpop.xlane.xlu0 %627
    %v629 = vsel %vm98, %v603, 0.0
    %630 = vadd.xlane.f32.xlu0 %v629
    %v631 = vpop.xlane.xlu0 %630
    %v632 = vsel %vm98, %v604, 0.0
    %633 = vadd.xlane.f32.xlu0 %v632
    %v634 = vpop.xlane.xlu0 %633
    %v635 = vsel %vm98, %v605, 0.0
    %636 = vadd.xlane.f32.xlu0 %v635
    %v637 = vpop.xlane.xlu0 %636
    %v638 = vsel %vm98, %v606, 0.0
    %639 = vadd.xlane.f32.xlu0 %v638
    %v640 = vpop.xlane.xlu0 %639
    %v641 = vsel %vm98, %v607, 0.0
    %642 = vadd.xlane.f32.xlu0 %v641
    %v643 = vpop.xlane.xlu0 %642
    %v644 = vsel %vm98, %v608, 0.0
    %645 = vadd.xlane.f32.xlu0 %v644
    %v646 = vpop.xlane.xlu0 %645
    %v647 = vsel %vm98, %v609, 0.0
    %648 = vadd.xlane.f32.xlu0 %v647
    %v649 = vpop.xlane.xlu0 %648
    %v650 = vsel %vm98, %v610, 0.0
    %651 = vadd.xlane.f32.xlu0 %v650
    %v652 = vpop.xlane.xlu0 %651
    %v653 = vsel %vm98, %v611, 0.0
    %654 = vadd.xlane.f32.xlu0 %v653
    %v655 = vpop.xlane.xlu0 %654
    %v656 = vsel %vm98, %v612, 0.0
    %657 = vadd.xlane.f32.xlu0 %v656
    %v658 = vpop.xlane.xlu0 %657
    %v659 = vsel %vm98, %v613, 0.0
    %660 = vadd.xlane.f32.xlu0 %v659
    %v661 = vpop.xlane.xlu0 %660
    %v678 = vlaneseq
    %v679 = vand.u32 %v678, 127
    %v680 = vlaneseq
    %v681 = vshrl.u32 %v680, 7
    %v682 = vsub.s32 %v679, %v681
    %v683 = vrot.slane %v616, %v682
    %v684 = vlaneseq
    %v685 = vshrl.u32 %v684, 7
    %v686 = vsub.s32 %v679, %v685
    %v687 = vrot.slane %v619, %v686
    %v688 = vlaneseq
    %v689 = vshrl.u32 %v688, 7
    %v690 = vsub.s32 %v679, %v689
    %v691 = vrot.slane %v622, %v690
    %v692 = vlaneseq
    %v693 = vshrl.u32 %v692, 7
    %v694 = vsub.s32 %v679, %v693
    %v695 = vrot.slane %v625, %v694
    %v696 = vlaneseq
    %v697 = vshrl.u32 %v696, 7
    %v698 = vsub.s32 %v679, %v697
    %v699 = vrot.slane %v628, %v698
    %v700 = vlaneseq
    %v701 = vshrl.u32 %v700, 7
    %v702 = vsub.s32 %v679, %v701
    %v703 = vrot.slane %v631, %v702
    %v704 = vlaneseq
    %v705 = vshrl.u32 %v704, 7
    %v706 = vsub.s32 %v679, %v705
    %v707 = vrot.slane %v634, %v706
    %v708 = vlaneseq
    %v709 = vshrl.u32 %v708, 7
    %v710 = vsub.s32 %v679, %v709
    %v711 = vrot.slane %v637, %v710
    %v712 = vlaneseq
    %v713 = vshrl.u32 %v712, 7
    %v714 = vsub.s32 %v679, %v713
    %v715 = vrot.slane %v640, %v714
    %v716 = vlaneseq
    %v717 = vshrl.u32 %v716, 7
    %v718 = vsub.s32 %v679, %v717
    %v719 = vrot.slane %v643, %v718
    %v720 = vlaneseq
    %v721 = vshrl.u32 %v720, 7
    %v722 = vsub.s32 %v679, %v721
    %v723 = vrot.slane %v646, %v722
    %v724 = vlaneseq
    %v725 = vshrl.u32 %v724, 7
    %v726 = vsub.s32 %v679, %v725
    %v727 = vrot.slane %v649, %v726
    %v728 = vlaneseq
    %v729 = vshrl.u32 %v728, 7
    %v730 = vsub.s32 %v679, %v729
    %v731 = vrot.slane %v652, %v730
    %v732 = vlaneseq
    %v733 = vshrl.u32 %v732, 7
    %v734 = vsub.s32 %v679, %v733
    %v735 = vrot.slane %v655, %v734
    %v736 = vlaneseq
    %v737 = vshrl.u32 %v736, 7
    %v738 = vsub.s32 %v679, %v737
    %v739 = vrot.slane %v658, %v738
    %v740 = vlaneseq
    %v741 = vshrl.u32 %v740, 7
    %v742 = vsub.s32 %v679, %v741
    %v743 = vrot.slane %v661, %v742
    %vm744 = vcmask 1041409
    %v745 = vsel %vm744, %v687, %v683
    %vm746 = vcmask 1042434
    %v747 = vsel %vm746, %v691, %v745
    %vm748 = vcmask 1043459
    %v749 = vsel %vm748, %v695, %v747
    %vm750 = vcmask 1044484
    %v751 = vsel %vm750, %v699, %v749
    %vm752 = vcmask 1045509
    %v753 = vsel %vm752, %v703, %v751
    %vm754 = vcmask 1046534
    %v755 = vsel %vm754, %v707, %v753
    %vm756 = vcmask 1047559
    %v757 = vsel %vm756, %v711, %v755
    %v758 = vsel %vm744, %v719, %v715
    %v759 = vsel %vm746, %v723, %v758
    %v760 = vsel %vm748, %v727, %v759
    %v761 = vsel %vm750, %v731, %v760
    %v762 = vsel %vm752, %v735, %v761
    %v763 = vsel %vm754, %v739, %v762
    %v764 = vsel %vm756, %v743, %v763
    %vm767 = vcmask 64512
    %768 = vst.msk [vmem:[%s5] sm:$0xff] %vm767, %v757
    %769 = vst.msk [vmem:[%s5 + $0x8] sm:$0xff] %vm767, %v764
    %v770 = vsel %vm767, %v757, -inf
    %771 = vmax.xlane.f32.xlu0 %v770
    %v772 = vpop.xlane.xlu0 %771
    %v773 = vsel %vm767, %v764, -inf
    %774 = vmax.xlane.f32.xlu0 %v773
    %v775 = vpop.xlane.xlu0 %774
    %v778 = vlaneseq
    %v779 = vshrl.u32 %v778, 7
    %v780 = vsub.s32 0, %v779
    %v781 = vrot.slane %v772, %v780
    %v782 = vlaneseq
    %v783 = vshrl.u32 %v782, 7
    %v784 = vsub.s32 1, %v783
    %v785 = vrot.slane %v772, %v784
    %v786 = vlaneseq
    %v787 = vshrl.u32 %v786, 7
    %v788 = vsub.s32 2, %v787
    %v789 = vrot.slane %v772, %v788
    %v790 = vlaneseq
    %v791 = vshrl.u32 %v790, 7
    %v792 = vsub.s32 3, %v791
    %v793 = vrot.slane %v772, %v792
    %v794 = vlaneseq
    %v795 = vshrl.u32 %v794, 7
    %v796 = vsub.s32 4, %v795
    %v797 = vrot.slane %v772, %v796
    %v798 = vlaneseq
    %v799 = vshrl.u32 %v798, 7
    %v800 = vsub.s32 5, %v799
    %v801 = vrot.slane %v772, %v800
    %v802 = vlaneseq
    %v803 = vshrl.u32 %v802, 7
    %v804 = vsub.s32 6, %v803
    %v805 = vrot.slane %v772, %v804
    %v806 = vlaneseq
    %v807 = vshrl.u32 %v806, 7
    %v808 = vsub.s32 7, %v807
    %v809 = vrot.slane %v772, %v808
    %v810 = vlaneseq
    %v811 = vshrl.u32 %v810, 7
    %v812 = vsub.s32 0, %v811
    %v813 = vrot.slane %v775, %v812
    %v814 = vlaneseq
    %v815 = vshrl.u32 %v814, 7
    %v816 = vsub.s32 1, %v815
    %v817 = vrot.slane %v775, %v816
    %v818 = vlaneseq
    %v819 = vshrl.u32 %v818, 7
    %v820 = vsub.s32 2, %v819
    %v821 = vrot.slane %v775, %v820
    %v822 = vlaneseq
    %v823 = vshrl.u32 %v822, 7
    %v824 = vsub.s32 3, %v823
    %v825 = vrot.slane %v775, %v824
    %v826 = vlaneseq
    %v827 = vshrl.u32 %v826, 7
    %v828 = vsub.s32 4, %v827
    %v829 = vrot.slane %v775, %v828
    %v830 = vlaneseq
    %v831 = vshrl.u32 %v830, 7
    %v832 = vsub.s32 5, %v831
    %v833 = vrot.slane %v775, %v832
    %v834 = vlaneseq
    %v835 = vshrl.u32 %v834, 7
    %v836 = vsub.s32 6, %v835
    %v837 = vrot.slane %v775, %v836
    %v838 = vlaneseq
    %v839 = vshrl.u32 %v838, 7
    %v840 = vsub.s32 7, %v839
    %v841 = vrot.slane %v775, %v840
    %v858 = vsub.f32 %v616, %v781
    %v859 = vsub.f32 %v619, %v785
    %v860 = vsub.f32 %v622, %v789
    %v861 = vsub.f32 %v625, %v793
    %v862 = vsub.f32 %v628, %v797
    %v863 = vsub.f32 %v631, %v801
    %v864 = vsub.f32 %v634, %v805
    %v865 = vsub.f32 %v637, %v809
    %v866 = vsub.f32 %v640, %v813
    %v867 = vsub.f32 %v643, %v817
    %v868 = vsub.f32 %v646, %v821
    %v869 = vsub.f32 %v649, %v825
    %v870 = vsub.f32 %v652, %v829
    %v871 = vsub.f32 %v655, %v833
    %v872 = vsub.f32 %v658, %v837
    %v873 = vsub.f32 %v661, %v841
    %v874 = vmul.f32 %v858, 1.442695
    %v875 = vpow.pop %v874
    %v876 = vmul.f32 %v859, 1.442695
    %v877 = vpow.pop %v876
    %v878 = vmul.f32 %v860, 1.442695
    %v879 = vpow.pop %v878
    %v880 = vmul.f32 %v861, 1.442695
    %v881 = vpow.pop %v880
    %v882 = vmul.f32 %v862, 1.442695
    %v883 = vpow.pop %v882
    %v884 = vmul.f32 %v863, 1.442695
    %v885 = vpow.pop %v884
    %v886 = vmul.f32 %v864, 1.442695
    %v887 = vpow.pop %v886
    %v888 = vmul.f32 %v865, 1.442695
    %v889 = vpow.pop %v888
    %v890 = vmul.f32 %v866, 1.442695
    %v891 = vpow.pop %v890
    %v892 = vmul.f32 %v867, 1.442695
    %v893 = vpow.pop %v892
    %v894 = vmul.f32 %v868, 1.442695
    %v895 = vpow.pop %v894
    %v896 = vmul.f32 %v869, 1.442695
    %v897 = vpow.pop %v896
    %v898 = vmul.f32 %v870, 1.442695
    %v899 = vpow.pop %v898
    %v900 = vmul.f32 %v871, 1.442695
    %v901 = vpow.pop %v900
    %v902 = vmul.f32 %v872, 1.442695
    %v903 = vpow.pop %v902
    %v904 = vmul.f32 %v873, 1.442695
    %v905 = vpow.pop %v904
    %922 = vset.pattern.permute.xlu0 0
    %923 = vperm.xlu0 %922, %v875
    %v924 = vpop.permute.xlu0 %923
    %925 = vset.pattern.permute.xlu0 0
    %926 = vperm.xlu0 %925, %v877
    %v927 = vpop.permute.xlu0 %926
    %928 = vset.pattern.permute.xlu0 0
    %929 = vperm.xlu0 %928, %v879
    %v930 = vpop.permute.xlu0 %929
    %931 = vset.pattern.permute.xlu0 0
    %932 = vperm.xlu0 %931, %v881
    %v933 = vpop.permute.xlu0 %932
    %934 = vset.pattern.permute.xlu0 0
    %935 = vperm.xlu0 %934, %v883
    %v936 = vpop.permute.xlu0 %935
    %937 = vset.pattern.permute.xlu0 0
    %938 = vperm.xlu0 %937, %v885
    %v939 = vpop.permute.xlu0 %938
    %940 = vset.pattern.permute.xlu0 0
    %941 = vperm.xlu0 %940, %v887
    %v942 = vpop.permute.xlu0 %941
    %943 = vset.pattern.permute.xlu0 0
    %944 = vperm.xlu0 %943, %v889
    %v945 = vpop.permute.xlu0 %944
    %946 = vset.pattern.permute.xlu0 0
    %947 = vperm.xlu0 %946, %v891
    %v948 = vpop.permute.xlu0 %947
    %949 = vset.pattern.permute.xlu0 0
    %950 = vperm.xlu0 %949, %v893
    %v951 = vpop.permute.xlu0 %950
    %952 = vset.pattern.permute.xlu0 0
    %953 = vperm.xlu0 %952, %v895
    %v954 = vpop.permute.xlu0 %953
    %955 = vset.pattern.permute.xlu0 0
    %956 = vperm.xlu0 %955, %v897
    %v957 = vpop.permute.xlu0 %956
    %958 = vset.pattern.permute.xlu0 0
    %959 = vperm.xlu0 %958, %v899
    %v960 = vpop.permute.xlu0 %959
    %961 = vset.pattern.permute.xlu0 0
    %962 = vperm.xlu0 %961, %v901
    %v963 = vpop.permute.xlu0 %962
    %964 = vset.pattern.permute.xlu0 0
    %965 = vperm.xlu0 %964, %v903
    %v966 = vpop.permute.xlu0 %965
    %967 = vset.pattern.permute.xlu0 0
    %968 = vperm.xlu0 %967, %v905
    %v969 = vpop.permute.xlu0 %968
    %v970 = vlaneseq
    %v971 = vshrl.u32 %v970, 7
    %v972 = vsub.s32 %v679, %v971
    %v973 = vrot.slane %v924, %v972
    %v974 = vlaneseq
    %v975 = vshrl.u32 %v974, 7
    %v976 = vsub.s32 %v679, %v975
    %v977 = vrot.slane %v927, %v976
    %v978 = vlaneseq
    %v979 = vshrl.u32 %v978, 7
    %v980 = vsub.s32 %v679, %v979
    %v981 = vrot.slane %v930, %v980
    %v982 = vlaneseq
    %v983 = vshrl.u32 %v982, 7
    %v984 = vsub.s32 %v679, %v983
    %v985 = vrot.slane %v933, %v984
    %v986 = vlaneseq
    %v987 = vshrl.u32 %v986, 7
    %v988 = vsub.s32 %v679, %v987
    %v989 = vrot.slane %v936, %v988
    %v990 = vlaneseq
    %v991 = vshrl.u32 %v990, 7
    %v992 = vsub.s32 %v679, %v991
    %v993 = vrot.slane %v939, %v992
    %v994 = vlaneseq
    %v995 = vshrl.u32 %v994, 7
    %v996 = vsub.s32 %v679, %v995
    %v997 = vrot.slane %v942, %v996
    %v998 = vlaneseq
    %v999 = vshrl.u32 %v998, 7
    %v1000 = vsub.s32 %v679, %v999
    %v1001 = vrot.slane %v945, %v1000
    %v1002 = vlaneseq
    %v1003 = vshrl.u32 %v1002, 7
    %v1004 = vsub.s32 %v679, %v1003
    %v1005 = vrot.slane %v948, %v1004
    %v1006 = vlaneseq
    %v1007 = vshrl.u32 %v1006, 7
    %v1008 = vsub.s32 %v679, %v1007
    %v1009 = vrot.slane %v951, %v1008
    %v1010 = vlaneseq
    %v1011 = vshrl.u32 %v1010, 7
    %v1012 = vsub.s32 %v679, %v1011
    %v1013 = vrot.slane %v954, %v1012
    %v1014 = vlaneseq
    %v1015 = vshrl.u32 %v1014, 7
    %v1016 = vsub.s32 %v679, %v1015
    %v1017 = vrot.slane %v957, %v1016
    %v1018 = vlaneseq
    %v1019 = vshrl.u32 %v1018, 7
    %v1020 = vsub.s32 %v679, %v1019
    %v1021 = vrot.slane %v960, %v1020
    %v1022 = vlaneseq
    %v1023 = vshrl.u32 %v1022, 7
    %v1024 = vsub.s32 %v679, %v1023
    %v1025 = vrot.slane %v963, %v1024
    %v1026 = vlaneseq
    %v1027 = vshrl.u32 %v1026, 7
    %v1028 = vsub.s32 %v679, %v1027
    %v1029 = vrot.slane %v966, %v1028
    %v1030 = vlaneseq
    %v1031 = vshrl.u32 %v1030, 7
    %v1032 = vsub.s32 %v679, %v1031
    %v1033 = vrot.slane %v969, %v1032
    %v1034 = vsel %vm744, %v977, %v973
    %v1035 = vsel %vm746, %v981, %v1034
    %v1036 = vsel %vm748, %v985, %v1035
    %v1037 = vsel %vm750, %v989, %v1036
    %v1038 = vsel %vm752, %v993, %v1037
    %v1039 = vsel %vm754, %v997, %v1038
    %v1040 = vsel %vm756, %v1001, %v1039
    %v1041 = vsel %vm744, %v1009, %v1005
    %v1042 = vsel %vm746, %v1013, %v1041
    %v1043 = vsel %vm748, %v1017, %v1042
    %v1044 = vsel %vm750, %v1021, %v1043
    %v1045 = vsel %vm752, %v1025, %v1044
    %v1046 = vsel %vm754, %v1029, %v1045
    %v1047 = vsel %vm756, %v1033, %v1046
    %v1050 = vsel %vm767, %v1040, 0.0
    %1051 = vadd.xlane.f32.xlu0 %v1050
    %v1052 = vpop.xlane.xlu0 %1051
    %v1053 = vsel %vm767, %v1047, 0.0
    %1054 = vadd.xlane.f32.xlu0 %v1053
    %v1055 = vpop.xlane.xlu0 %1054
    %v1056 = vrcp.pop %v1052
    %v1057 = vrcp.pop %v1055
    %v1060 = vlaneseq
    %v1061 = vshrl.u32 %v1060, 7
    %v1062 = vsub.s32 0, %v1061
    %v1063 = vrot.slane %v1056, %v1062
    %v1064 = vlaneseq
    %v1065 = vshrl.u32 %v1064, 7
    %v1066 = vsub.s32 1, %v1065
    %v1067 = vrot.slane %v1056, %v1066
    %v1068 = vlaneseq
    %v1069 = vshrl.u32 %v1068, 7
    %v1070 = vsub.s32 2, %v1069
    %v1071 = vrot.slane %v1056, %v1070
    %v1072 = vlaneseq
    %v1073 = vshrl.u32 %v1072, 7
    %v1074 = vsub.s32 3, %v1073
    %v1075 = vrot.slane %v1056, %v1074
    %v1076 = vlaneseq
    %v1077 = vshrl.u32 %v1076, 7
    %v1078 = vsub.s32 4, %v1077
    %v1079 = vrot.slane %v1056, %v1078
    %v1080 = vlaneseq
    %v1081 = vshrl.u32 %v1080, 7
    %v1082 = vsub.s32 5, %v1081
    %v1083 = vrot.slane %v1056, %v1082
    %v1084 = vlaneseq
    %v1085 = vshrl.u32 %v1084, 7
    %v1086 = vsub.s32 6, %v1085
    %v1087 = vrot.slane %v1056, %v1086
    %v1088 = vlaneseq
    %v1089 = vshrl.u32 %v1088, 7
    %v1090 = vsub.s32 7, %v1089
    %v1091 = vrot.slane %v1056, %v1090
    %v1092 = vlaneseq
    %v1093 = vshrl.u32 %v1092, 7
    %v1094 = vsub.s32 0, %v1093
    %v1095 = vrot.slane %v1057, %v1094
    %v1096 = vlaneseq
    %v1097 = vshrl.u32 %v1096, 7
    %v1098 = vsub.s32 1, %v1097
    %v1099 = vrot.slane %v1057, %v1098
    %v1100 = vlaneseq
    %v1101 = vshrl.u32 %v1100, 7
    %v1102 = vsub.s32 2, %v1101
    %v1103 = vrot.slane %v1057, %v1102
    %v1104 = vlaneseq
    %v1105 = vshrl.u32 %v1104, 7
    %v1106 = vsub.s32 3, %v1105
    %v1107 = vrot.slane %v1057, %v1106
    %v1108 = vlaneseq
    %v1109 = vshrl.u32 %v1108, 7
    %v1110 = vsub.s32 4, %v1109
    %v1111 = vrot.slane %v1057, %v1110
    %v1112 = vlaneseq
    %v1113 = vshrl.u32 %v1112, 7
    %v1114 = vsub.s32 5, %v1113
    %v1115 = vrot.slane %v1057, %v1114
    %v1116 = vlaneseq
    %v1117 = vshrl.u32 %v1116, 7
    %v1118 = vsub.s32 6, %v1117
    %v1119 = vrot.slane %v1057, %v1118
    %v1120 = vlaneseq
    %v1121 = vshrl.u32 %v1120, 7
    %v1122 = vsub.s32 7, %v1121
    %v1123 = vrot.slane %v1057, %v1122
    %v1140 = vmul.f32 %v875, %v1063
    %v1141 = vmul.f32 %v877, %v1067
    %v1142 = vmul.f32 %v879, %v1071
    %v1143 = vmul.f32 %v881, %v1075
    %v1144 = vmul.f32 %v883, %v1079
    %v1145 = vmul.f32 %v885, %v1083
    %v1146 = vmul.f32 %v887, %v1087
    %v1147 = vmul.f32 %v889, %v1091
    %v1148 = vmul.f32 %v891, %v1095
    %v1149 = vmul.f32 %v893, %v1099
    %v1150 = vmul.f32 %v895, %v1103
    %v1151 = vmul.f32 %v897, %v1107
    %v1152 = vmul.f32 %v899, %v1111
    %v1153 = vmul.f32 %v901, %v1115
    %v1154 = vmul.f32 %v903, %v1119
    %v1155 = vmul.f32 %v905, %v1123
    %1157 = vset.pattern.permute.xlu0 0
    %1158 = vperm.xlu0 %1157, %v1140
    %v1159 = vpop.permute.xlu0 %1158
    %1162 = vset.pattern.permute.xlu0 0
    %1163 = vperm.xlu0 %1162, %v1141
    %v1164 = vpop.permute.xlu0 %1163
    %1167 = vset.pattern.permute.xlu0 0
    %1168 = vperm.xlu0 %1167, %v1142
    %v1169 = vpop.permute.xlu0 %1168
    %1172 = vset.pattern.permute.xlu0 0
    %1173 = vperm.xlu0 %1172, %v1143
    %v1174 = vpop.permute.xlu0 %1173
    %1177 = vset.pattern.permute.xlu0 0
    %1178 = vperm.xlu0 %1177, %v1144
    %v1179 = vpop.permute.xlu0 %1178
    %1182 = vset.pattern.permute.xlu0 0
    %1183 = vperm.xlu0 %1182, %v1145
    %v1184 = vpop.permute.xlu0 %1183
    %1187 = vset.pattern.permute.xlu0 0
    %1188 = vperm.xlu0 %1187, %v1146
    %v1189 = vpop.permute.xlu0 %1188
    %1192 = vset.pattern.permute.xlu0 0
    %1193 = vperm.xlu0 %1192, %v1147
    %v1194 = vpop.permute.xlu0 %1193
    %1197 = vset.pattern.permute.xlu0 0
    %1198 = vperm.xlu0 %1197, %v1148
    %v1199 = vpop.permute.xlu0 %1198
    %1202 = vset.pattern.permute.xlu0 0
    %1203 = vperm.xlu0 %1202, %v1149
    %v1204 = vpop.permute.xlu0 %1203
    %1207 = vset.pattern.permute.xlu0 0
    %1208 = vperm.xlu0 %1207, %v1150
    %v1209 = vpop.permute.xlu0 %1208
    %1212 = vset.pattern.permute.xlu0 0
    %1213 = vperm.xlu0 %1212, %v1151
    %v1214 = vpop.permute.xlu0 %1213
    %1217 = vset.pattern.permute.xlu0 0
    %1218 = vperm.xlu0 %1217, %v1152
    %v1219 = vpop.permute.xlu0 %1218
    %1222 = vset.pattern.permute.xlu0 0
    %1223 = vperm.xlu0 %1222, %v1153
    %v1224 = vpop.permute.xlu0 %1223
    %1227 = vset.pattern.permute.xlu0 0
    %1228 = vperm.xlu0 %1227, %v1154
    %v1229 = vpop.permute.xlu0 %1228
    %1232 = vset.pattern.permute.xlu0 0
    %1233 = vperm.xlu0 %1232, %v1155
    %v1234 = vpop.permute.xlu0 %1233
    %v1236 = vmul.f32 %v1159, %v78
    %v1237 = vmul.f32 %v1164, %v79
    %v1238 = vmul.f32 %v1169, %v80
    %v1239 = vmul.f32 %v1174, %v81
    %v1240 = vmul.f32 %v1179, %v82
    %v1241 = vmul.f32 %v1184, %v83
    %v1242 = vmul.f32 %v1189, %v84
    %v1243 = vmul.f32 %v1194, %v85
    %v1244 = vmul.f32 %v1199, %v86
    %v1245 = vmul.f32 %v1204, %v87
    %v1246 = vmul.f32 %v1209, %v88
    %v1247 = vmul.f32 %v1214, %v89
    %v1248 = vmul.f32 %v1219, %v90
    %v1249 = vmul.f32 %v1224, %v91
    %v1250 = vmul.f32 %v1229, %v92
    %v1251 = vmul.f32 %v1234, %v93
    %v1252 = vsel %vm98, %v1236, 0.0
    %v1253 = vrot.slane %v1252, 4
    %v1254 = vadd.f32 %v1252, %v1253
    %v1255 = vrot.slane %v1254, 2
    %v1256 = vadd.f32 %v1254, %v1255
    %v1257 = vrot.slane %v1256, 1
    %v1258 = vadd.f32 %v1256, %v1257
    %v1259 = vsel %vm98, %v1237, 0.0
    %v1260 = vrot.slane %v1259, 4
    %v1261 = vadd.f32 %v1259, %v1260
    %v1262 = vrot.slane %v1261, 2
    %v1263 = vadd.f32 %v1261, %v1262
    %v1264 = vrot.slane %v1263, 1
    %v1265 = vadd.f32 %v1263, %v1264
    %v1266 = vsel %vm98, %v1238, 0.0
    %v1267 = vrot.slane %v1266, 4
    %v1268 = vadd.f32 %v1266, %v1267
    %v1269 = vrot.slane %v1268, 2
    %v1270 = vadd.f32 %v1268, %v1269
    %v1271 = vrot.slane %v1270, 1
    %v1272 = vadd.f32 %v1270, %v1271
    %v1273 = vsel %vm98, %v1239, 0.0
    %v1274 = vrot.slane %v1273, 4
    %v1275 = vadd.f32 %v1273, %v1274
    %v1276 = vrot.slane %v1275, 2
    %v1277 = vadd.f32 %v1275, %v1276
    %v1278 = vrot.slane %v1277, 1
    %v1279 = vadd.f32 %v1277, %v1278
    %v1280 = vsel %vm98, %v1240, 0.0
    %v1281 = vrot.slane %v1280, 4
    %v1282 = vadd.f32 %v1280, %v1281
    %v1283 = vrot.slane %v1282, 2
    %v1284 = vadd.f32 %v1282, %v1283
    %v1285 = vrot.slane %v1284, 1
    %v1286 = vadd.f32 %v1284, %v1285
    %v1287 = vsel %vm98, %v1241, 0.0
    %v1288 = vrot.slane %v1287, 4
    %v1289 = vadd.f32 %v1287, %v1288
    %v1290 = vrot.slane %v1289, 2
    %v1291 = vadd.f32 %v1289, %v1290
    %v1292 = vrot.slane %v1291, 1
    %v1293 = vadd.f32 %v1291, %v1292
    %v1294 = vsel %vm98, %v1242, 0.0
    %v1295 = vrot.slane %v1294, 4
    %v1296 = vadd.f32 %v1294, %v1295
    %v1297 = vrot.slane %v1296, 2
    %v1298 = vadd.f32 %v1296, %v1297
    %v1299 = vrot.slane %v1298, 1
    %v1300 = vadd.f32 %v1298, %v1299
    %v1301 = vsel %vm98, %v1243, 0.0
    %v1302 = vrot.slane %v1301, 4
    %v1303 = vadd.f32 %v1301, %v1302
    %v1304 = vrot.slane %v1303, 2
    %v1305 = vadd.f32 %v1303, %v1304
    %v1306 = vrot.slane %v1305, 1
    %v1307 = vadd.f32 %v1305, %v1306
    %v1308 = vsel %vm98, %v1244, 0.0
    %v1309 = vrot.slane %v1308, 4
    %v1310 = vadd.f32 %v1308, %v1309
    %v1311 = vrot.slane %v1310, 2
    %v1312 = vadd.f32 %v1310, %v1311
    %v1313 = vrot.slane %v1312, 1
    %v1314 = vadd.f32 %v1312, %v1313
    %v1315 = vsel %vm98, %v1245, 0.0
    %v1316 = vrot.slane %v1315, 4
    %v1317 = vadd.f32 %v1315, %v1316
    %v1318 = vrot.slane %v1317, 2
    %v1319 = vadd.f32 %v1317, %v1318
    %v1320 = vrot.slane %v1319, 1
    %v1321 = vadd.f32 %v1319, %v1320
    %v1322 = vsel %vm98, %v1246, 0.0
    %v1323 = vrot.slane %v1322, 4
    %v1324 = vadd.f32 %v1322, %v1323
    %v1325 = vrot.slane %v1324, 2
    %v1326 = vadd.f32 %v1324, %v1325
    %v1327 = vrot.slane %v1326, 1
    %v1328 = vadd.f32 %v1326, %v1327
    %v1329 = vsel %vm98, %v1247, 0.0
    %v1330 = vrot.slane %v1329, 4
    %v1331 = vadd.f32 %v1329, %v1330
    %v1332 = vrot.slane %v1331, 2
    %v1333 = vadd.f32 %v1331, %v1332
    %v1334 = vrot.slane %v1333, 1
    %v1335 = vadd.f32 %v1333, %v1334
    %v1336 = vsel %vm98, %v1248, 0.0
    %v1337 = vrot.slane %v1336, 4
    %v1338 = vadd.f32 %v1336, %v1337
    %v1339 = vrot.slane %v1338, 2
    %v1340 = vadd.f32 %v1338, %v1339
    %v1341 = vrot.slane %v1340, 1
    %v1342 = vadd.f32 %v1340, %v1341
    %v1343 = vsel %vm98, %v1249, 0.0
    %v1344 = vrot.slane %v1343, 4
    %v1345 = vadd.f32 %v1343, %v1344
    %v1346 = vrot.slane %v1345, 2
    %v1347 = vadd.f32 %v1345, %v1346
    %v1348 = vrot.slane %v1347, 1
    %v1349 = vadd.f32 %v1347, %v1348
    %v1350 = vsel %vm98, %v1250, 0.0
    %v1351 = vrot.slane %v1350, 4
    %v1352 = vadd.f32 %v1350, %v1351
    %v1353 = vrot.slane %v1352, 2
    %v1354 = vadd.f32 %v1352, %v1353
    %v1355 = vrot.slane %v1354, 1
    %v1356 = vadd.f32 %v1354, %v1355
    %v1357 = vsel %vm98, %v1251, 0.0
    %v1358 = vrot.slane %v1357, 4
    %v1359 = vadd.f32 %v1357, %v1358
    %v1360 = vrot.slane %v1359, 2
    %v1361 = vadd.f32 %v1359, %v1360
    %v1362 = vrot.slane %v1361, 1
    %v1363 = vadd.f32 %v1361, %v1362
    %v1380 = vsel %vm744, %v1265, %v1258
    %v1381 = vsel %vm746, %v1272, %v1380
    %v1382 = vsel %vm748, %v1279, %v1381
    %v1383 = vsel %vm750, %v1286, %v1382
    %v1384 = vsel %vm752, %v1293, %v1383
    %v1385 = vsel %vm754, %v1300, %v1384
    %v1386 = vsel %vm756, %v1307, %v1385
    %v1387 = vsel %vm744, %v1321, %v1314
    %v1388 = vsel %vm746, %v1328, %v1387
    %v1389 = vsel %vm748, %v1335, %v1388
    %v1390 = vsel %vm750, %v1342, %v1389
    %v1391 = vsel %vm752, %v1349, %v1390
    %v1392 = vsel %vm754, %v1356, %v1391
    %v1393 = vsel %vm756, %v1363, %v1392
    %1396 = vst.msk [vmem:[#allocation10] sm:$0xff] %vm98, %v1386
    %1397 = vst.msk [vmem:[#allocation10 + $0x8] sm:$0xff] %vm98, %v1393
    // Predicated region
    $region38: #{tpu_custom_call.1} parent=1 // pred_check
      _
    $region39: #{tpu_custom_call.1} parent=1 // pred_check_branch
      %1399 = sbr.rel (0) target = $region41
    $region40: #{tpu_custom_call.1} parent=1 // pred_region
      _
    $region41: #{tpu_custom_call.1} parent=1 // pred_fallthru
      _
    // Predicated region
    $region42: #{tpu_custom_call.1} parent=1 // pred_check
      _
    $region43: #{tpu_custom_call.1} parent=1 // pred_check_branch
      %1401 = sbr.rel (0) target = $region45
    $region44: #{tpu_custom_call.1} parent=1 // pred_region
      %s1403 = ssub.s32 256, 256
      %1404 = vsyncadd [#allocation4], %s1403
      %s1405 = sshll.u32 [#allocation10], 4
      %s1406 = int_to_ptr.vmem [resolvable:$true] %s1405
      %1411 = dma.vmem_to_hbm [thread:$0]  %s1406, 256, %s6, [#allocation4], 128, 128, 8
    $region45: #{tpu_custom_call.1} parent=1 // pred_fallthru
      _
    // Predicated region
    $region46: #{tpu_custom_call.1} parent=1 // pred_check
      _
    $region47: #{tpu_custom_call.1} parent=1 // pred_check_branch
      %1413 = sbr.rel (0) target = $region49
    $region48: #{tpu_custom_call.1} parent=1 // pred_region
      _
    $region49: #{tpu_custom_call.1} parent=1 // pred_fallthru
      _
    // Predicated region
    $region50: #{tpu_custom_call.1} parent=1 // pred_check
      _
    $region51: #{tpu_custom_call.1} parent=1 // pred_check_branch
      %1415 = sbr.rel (0) target = $region53
    $region52: #{tpu_custom_call.1} parent=1 // pred_region
      %1416 = dma.done [#allocation4], 256
    $region53: #{tpu_custom_call.1} parent=1 // pred_fallthru
      _
    %1417 = vsyncpa [#allocation3], 1
    %1418 = vsyncpa [#allocation6], 1
    %1419 = vsyncpa [#allocation9], 1
    %1420 = vsyncpa [#allocation4], 1

</llo_original>
